<compile_context>
chip_gen: v6e
topology: v6e:2x2x1
jax: 0.10.0
libtpu: 0.0.40
codegen_flags: <defaults>
</compile_context>

<pallas_src>
import jax
import jax.numpy as jnp
from jax import lax
from jax.experimental import pallas as pl
from jax.experimental.pallas import tpu as pltpu


# Contract the last dim of both operands (A @ B^T) -- same dimension numbers the
# splash/flash attention kernels use for q @ k^T.
_NT_DIMS = (((1,), (1,)), ((), ()))


def _round_up(x: int, m: int) -> int:
    return ((x + m - 1) // m) * m


def _choose_batch_tile(batch: int):
    """Pick (TB, nb).  TB == batch (block == full dims, always legal) for small B;
    otherwise >=2 blocks of up to 1024 rows, TB a multiple of 128 because TB is the
    lane dim of the lane-packed output block."""
    if batch <= 256:
        return batch, 1
    tb = min(1024, _round_up(pl.cdiv(batch, 2), 128))
    return tb, pl.cdiv(batch, tb)


def _network_kernel(x_ref, th_ref, wo_ref, wp_ref, bb_ref, w1_ref, b1_ref,
                    w2_ref, b2_ref, out_ref):
    """Fused ratio-estimator MLP for one batch tile.

    x_ref  : (TB, obs_dim)    f32   streamed observation rows
    th_ref : (TB, param_dim)  f32   streamed parameter rows
    wo_ref : (obs_dim, H2p)   bf16  obs half of block-diagonal first layer (resident)
    wp_ref : (param_dim, H2p) bf16  param half (resident)
    bb_ref : (1, H2p)         f32   merged first-layer bias
    w1_ref : (H2p, Hp)        bf16  classifier hidden weight (resident)
    b1_ref : (1, Hp)          f32
    w2_ref : (8, Hp)          bf16  final weight in row 0, rows 1..7 zero (sublane pad)
    b2_ref : (1, 1)           f32   scalar output bias (SMEM)
    out_ref: (1, TB)          f32   lane-packed logits for this batch tile
    """
    xb = x_ref[...].astype(jnp.bfloat16)
    tb = th_ref[...].astype(jnp.bfloat16)

    # Merged obs/param transforms (equivalent to concat([feats, marg])): MXU, f32 acc.
    h1 = jnp.dot(xb, wo_ref[...], preferred_element_type=jnp.float32)
    h1 = h1 + jnp.dot(tb, wp_ref[...], preferred_element_type=jnp.float32)
    h1 = jnp.maximum(h1 + bb_ref[...], 0.0).astype(jnp.bfloat16)

    # Classifier hidden layer.
    h2 = jnp.dot(h1, w1_ref[...], preferred_element_type=jnp.float32)
    h2 = jnp.maximum(h2 + b1_ref[...], 0.0).astype(jnp.bfloat16)

    # Final N=1 layer, produced directly lane-packed along the batch axis:
    # (8, Hp) @ (TB, Hp)^T -> (8, TB); row 0 carries the logits (MXU has ample slack).
    prod = lax.dot_general(w2_ref[...], h2, _NT_DIMS,
                           preferred_element_type=jnp.float32)
    out_ref[...] = (prod[0:1, :] + b2_ref[0, 0]).astype(out_ref.dtype)


def _pack_params(params, obs_dim, param_dim):
    """Merge/pad the per-module weights into the fused-kernel layout (done once)."""
    hidden = params["w_obs"].shape[1]
    h2 = 2 * hidden
    h2p = _round_up(h2, 128)
    hp = _round_up(hidden, 128)

    # Block-diagonal first layer, split into its obs / param row-blocks so the two
    # activations can be streamed without a wrapper-side concat.
    wo = jnp.zeros((obs_dim, h2p), jnp.float32).at[:, :hidden].set(params["w_obs"])
    wp = jnp.zeros((param_dim, h2p), jnp.float32).at[:, hidden:h2].set(params["w_par"])
    bb = jnp.zeros((1, h2p), jnp.float32)
    bb = bb.at[:, :hidden].set(params["b_obs"]).at[:, hidden:h2].set(params["b_par"])

    # Classifier concat-Linear as one stacked (2H, H) weight, zero-padded.
    w1 = jnp.zeros((h2p, hp), jnp.float32)
    w1 = w1.at[:hidden, :hidden].set(params["w1a"])
    w1 = w1.at[hidden:h2, :hidden].set(params["w1b"])
    b1 = jnp.zeros((1, hp), jnp.float32).at[:, :hidden].set(params["b1"])

    # Final (H, 1) weight stored as row 0 of an 8-sublane padded matrix.
    w2 = jnp.zeros((8, hp), jnp.float32).at[0, :hidden].set(params["w2"][:, 0])
    b2 = params["b2"].reshape(1, 1).astype(jnp.float32)

    return {
        "wo": wo.astype(jnp.bfloat16), "wp": wp.astype(jnp.bfloat16), "bb": bb,
        "w1": w1.astype(jnp.bfloat16), "b1": b1,
        "w2": w2.astype(jnp.bfloat16), "b2": b2,
    }


def network_forward(observation, parameters, packed):
    """observation: dict with key 'x' [B, obs_dim]; parameters: [B, param_dim]."""
    x = observation["x"]
    theta = parameters
    B, obs_dim = x.shape
    param_dim = theta.shape[1]
    h2p = packed["wo"].shape[1]
    hp = packed["w1"].shape[1]

    TB, nb = _choose_batch_tile(B)
    b_padded = nb * TB

    # Advisory cost estimate.
    flops = 2 * B * ((obs_dim + param_dim) * h2p + h2p * hp + 8 * hp)
    weight_bytes = int(
        (packed["wo"].size + packed["wp"].size + packed["w1"].size
         + packed["w2"].size) * 2
        + (packed["bb"].size + packed["b1"].size + 1) * 4)
    bytes_accessed = int(B * (obs_dim + param_dim) * 4 + weight_bytes + b_padded * 4)

    # Right-size the scoped VMEM limit (resident weights + double-buffered streams +
    # f32 intermediates), with generous headroom, capped at 32 MiB for v7x portability.
    per_step_bytes = int(2 * TB * (obs_dim + param_dim) * 4    # in tiles (x2 buffers)
                         + 2 * TB * 4                          # out row (x2 buffers)
                         + TB * (h2p + hp) * 8)                # intermediates headroom
    vmem_limit = min(32 << 20, (4 << 20) + 2 * (weight_bytes + per_step_bytes))

    out_row = pl.pallas_call(
        _network_kernel,
        out_shape=jax.ShapeDtypeStruct((1, b_padded), jnp.float32),
        grid=(nb,),
        in_specs=[
            pl.BlockSpec((TB, obs_dim), lambda i: (i, 0)),       # streamed obs rows
            pl.BlockSpec((TB, param_dim), lambda i: (i, 0)),     # streamed param rows
            pl.BlockSpec((obs_dim, h2p), lambda i: (0, 0)),      # resident weights
            pl.BlockSpec((param_dim, h2p), lambda i: (0, 0)),
            pl.BlockSpec((1, h2p), lambda i: (0, 0)),
            pl.BlockSpec((h2p, hp), lambda i: (0, 0)),
            pl.BlockSpec((1, hp), lambda i: (0, 0)),
            pl.BlockSpec((8, hp), lambda i: (0, 0)),
            pl.BlockSpec(memory_space=pltpu.MemorySpace.SMEM),   # scalar output bias
        ],
        out_specs=pl.BlockSpec((1, TB), lambda i: (0, i)),       # lane-packed logits
        compiler_params=pltpu.CompilerParams(
            dimension_semantics=("parallel",),                   # megacore on v7x
            vmem_limit_bytes=int(vmem_limit),
        ),
        cost_estimate=pl.CostEstimate(
            flops=flops, transcendentals=0, bytes_accessed=bytes_accessed),
    )(x, theta, packed["wo"], packed["wp"], packed["bb"],
      packed["w1"], packed["b1"], packed["w2"], packed["b2"])

    # Lane-packed row -> (B, 1) logits (padded tail columns are discarded).
    return out_row[0, :B].reshape(B, 1)


def init_params(key, obs_dim, param_dim, hidden):
    """Deterministic synthetic parameters (weights stored as [in, out])."""
    ks = jax.random.split(key, 6)

    def w(k, fan_in, fan_out):
        scale = 1.0 / jnp.sqrt(jnp.float32(fan_in))
        return jax.random.uniform(k, (fan_in, fan_out), jnp.float32,
                                  minval=-scale, maxval=scale)

    return {
        "w_obs": w(ks[0], obs_dim, hidden),
        "b_obs": jnp.zeros((1, hidden), jnp.float32),
        "w_par": w(ks[1], param_dim, hidden),
        "b_par": jnp.zeros((1, hidden), jnp.float32),
        # classifier first layer acts on concat([feats, marg]) of width 2*hidden,
        # stored as the two halves W1a / W1b.
        "w1a": w(ks[2], hidden, hidden),
        "w1b": w(ks[3], hidden, hidden),
        "b1": jnp.zeros((1, hidden), jnp.float32),
        "w2": w(ks[4], hidden, 1),
        "b2": jnp.zeros((1, 1), jnp.float32),
    }


def _reference_forward(observation, parameters, params):
    """Pure-JAX reference mirroring the kernel's bf16 operand / f32 accumulate dtypes."""
    bf = lambda a: a.astype(jnp.bfloat16).astype(jnp.float32)
    x, theta = bf(observation["x"]), bf(parameters)
    feats = jnp.maximum(x @ bf(params["w_obs"]) + params["b_obs"], 0.0)
    marg = jnp.maximum(theta @ bf(params["w_par"]) + params["b_par"], 0.0)
    h = jnp.maximum(bf(feats) @ bf(params["w1a"]) + bf(marg) @ bf(params["w1b"])
                    + params["b1"], 0.0)
    return bf(h) @ bf(params["w2"]) + params["b2"]


if __name__ == "__main__":
    key = jax.random.PRNGKey(0)
    k_obs, k_par, k_param = jax.random.split(key, 3)

    B, OBS_DIM, PARAM_DIM, HIDDEN = 2, 16, 8, 32

    observation = {"x": jax.random.normal(k_obs, (B, OBS_DIM), jnp.float32)}
    parameters = jax.random.normal(k_par, (B, PARAM_DIM), jnp.float32)
    params = init_params(k_param, OBS_DIM, PARAM_DIM, HIDDEN)
    packed = _pack_params(params, OBS_DIM, PARAM_DIM)

    out = jax.jit(network_forward)(observation, parameters, packed)
    jax.block_until_ready(out)

    assert out.shape == (B, 1) and out.dtype == jnp.float32
    assert bool(jnp.all(jnp.isfinite(out)))

    ref = _reference_forward(observation, parameters, params)
    assert jnp.allclose(out, ref, rtol=2e-2, atol=2e-2), (out, ref)

    print("KERNEL_OK")
</pallas_src>

<mosaic_0001>
module attributes {stable_mosaic.version = 11 : i64} {
  func.func @_network_kernel(%arg0: i32, %arg1: memref<2x16xf32, #tpu.memory_space<vmem>>, %arg2: memref<2x8xf32, #tpu.memory_space<vmem>>, %arg3: memref<16x128xbf16, #tpu.memory_space<vmem>>, %arg4: memref<8x128xbf16, #tpu.memory_space<vmem>>, %arg5: memref<1x128xf32, #tpu.memory_space<vmem>>, %arg6: memref<128x128xbf16, #tpu.memory_space<vmem>>, %arg7: memref<1x128xf32, #tpu.memory_space<vmem>>, %arg8: memref<8x128xbf16, #tpu.memory_space<vmem>>, %arg9: memref<1x1xf32, #tpu.memory_space<smem>>, %arg10: memref<1x2xf32, #tpu.memory_space<vmem>>) attributes {dimension_semantics = [#tpu.dimension_semantics<parallel>], iteration_bounds = array<i64: 1>, scalar_prefetch = 0 : i64, scratch_operands = 0 : i64, tpu.core_type = #tpu.core_type<tc>, window_params = [{transform_indices = @transform_0, window_bounds = array<i64: 2, 16>}, {transform_indices = @transform_1, window_bounds = array<i64: 2, 8>}, {pipeline_mode = #tpu.pipeline_mode<synchronous>, transform_indices = @transform_2, window_bounds = array<i64: 16, 128>}, {pipeline_mode = #tpu.pipeline_mode<synchronous>, transform_indices = @transform_3, window_bounds = array<i64: 8, 128>}, {pipeline_mode = #tpu.pipeline_mode<synchronous>, transform_indices = @transform_4, window_bounds = array<i64: 1, 128>}, {pipeline_mode = #tpu.pipeline_mode<synchronous>, transform_indices = @transform_5, window_bounds = array<i64: 128, 128>}, {pipeline_mode = #tpu.pipeline_mode<synchronous>, transform_indices = @transform_6, window_bounds = array<i64: 1, 128>}, {pipeline_mode = #tpu.pipeline_mode<synchronous>, transform_indices = @transform_7, window_bounds = array<i64: 8, 128>}, {transform_indices = @transform_8, window_bounds = array<i64: 1, 1>}, {transform_indices = @transform_9, window_bounds = array<i64: 1, 2>}]} {
    %c0 = arith.constant 0 : index
    %c0_0 = arith.constant 0 : index
    %0 = vector.load %arg1[%c0, %c0_0] : memref<2x16xf32, #tpu.memory_space<vmem>>, vector<2x16xf32>
    %1 = arith.truncf %0 : vector<2x16xf32> to vector<2x16xbf16>
    %c0_1 = arith.constant 0 : index
    %c0_2 = arith.constant 0 : index
    %2 = vector.load %arg2[%c0_1, %c0_2] : memref<2x8xf32, #tpu.memory_space<vmem>>, vector<2x8xf32>
    %3 = arith.truncf %2 : vector<2x8xf32> to vector<2x8xbf16>
    %c0_3 = arith.constant 0 : index
    %c0_4 = arith.constant 0 : index
    %4 = vector.load %arg3[%c0_3, %c0_4] : memref<16x128xbf16, #tpu.memory_space<vmem>>, vector<16x128xbf16>
    %cst = arith.constant dense<0.000000e+00> : vector<2x128xf32>
    %5 = tpu.matmul %1, %4, %cst {dimension_numbers = #tpu.dot_dimension_numbers<[1], [0], [0], [1], [0, 0, 1, 1], [], []>} : vector<2x16xbf16>, vector<16x128xbf16>, vector<2x128xf32> -> vector<2x128xf32>
    %c0_5 = arith.constant 0 : index
    %c0_6 = arith.constant 0 : index
    %6 = vector.load %arg4[%c0_5, %c0_6] : memref<8x128xbf16, #tpu.memory_space<vmem>>, vector<8x128xbf16>
    %cst_7 = arith.constant dense<0.000000e+00> : vector<2x128xf32>
    %7 = tpu.matmul %3, %6, %cst_7 {dimension_numbers = #tpu.dot_dimension_numbers<[1], [0], [0], [1], [0, 0, 1, 1], [], []>} : vector<2x8xbf16>, vector<8x128xbf16>, vector<2x128xf32> -> vector<2x128xf32>
    %8 = arith.addf %5, %7 : vector<2x128xf32>
    %c0_8 = arith.constant 0 : index
    %c0_9 = arith.constant 0 : index
    %9 = vector.load %arg5[%c0_8, %c0_9] : memref<1x128xf32, #tpu.memory_space<vmem>>, vector<1x128xf32>
    %10 = vector.broadcast %9 : vector<1x128xf32> to vector<2x128xf32>
    %11 = arith.addf %8, %10 : vector<2x128xf32>
    %cst_10 = arith.constant 0.000000e+00 : f32
    %12 = vector.broadcast %cst_10 : f32 to vector<2x128xf32>
    %13 = arith.maximumf %11, %12 : vector<2x128xf32>
    %14 = arith.truncf %13 : vector<2x128xf32> to vector<2x128xbf16>
    %c0_11 = arith.constant 0 : index
    %c0_12 = arith.constant 0 : index
    %15 = vector.load %arg6[%c0_11, %c0_12] : memref<128x128xbf16, #tpu.memory_space<vmem>>, vector<128x128xbf16>
    %cst_13 = arith.constant dense<0.000000e+00> : vector<2x128xf32>
    %16 = tpu.matmul %14, %15, %cst_13 {dimension_numbers = #tpu.dot_dimension_numbers<[1], [0], [0], [1], [0, 0, 1, 1], [], []>} : vector<2x128xbf16>, vector<128x128xbf16>, vector<2x128xf32> -> vector<2x128xf32>
    %c0_14 = arith.constant 0 : index
    %c0_15 = arith.constant 0 : index
    %17 = vector.load %arg7[%c0_14, %c0_15] : memref<1x128xf32, #tpu.memory_space<vmem>>, vector<1x128xf32>
    %18 = vector.broadcast %17 : vector<1x128xf32> to vector<2x128xf32>
    %19 = arith.addf %16, %18 : vector<2x128xf32>
    %cst_16 = arith.constant 0.000000e+00 : f32
    %20 = vector.broadcast %cst_16 : f32 to vector<2x128xf32>
    %21 = arith.maximumf %19, %20 : vector<2x128xf32>
    %22 = arith.truncf %21 : vector<2x128xf32> to vector<2x128xbf16>
    %c0_17 = arith.constant 0 : index
    %c0_18 = arith.constant 0 : index
    %23 = vector.load %arg8[%c0_17, %c0_18] : memref<8x128xbf16, #tpu.memory_space<vmem>>, vector<8x128xbf16>
    %cst_19 = arith.constant dense<0.000000e+00> : vector<8x2xf32>
    %24 = tpu.matmul %23, %22, %cst_19 {dimension_numbers = #tpu.dot_dimension_numbers<[1], [1], [0], [0], [0, 0, 1, 0], [], []>} : vector<8x128xbf16>, vector<2x128xbf16>, vector<8x2xf32> -> vector<8x2xf32>
    %25 = vector.extract_strided_slice %24 {offsets = [0, 0], sizes = [1, 2], strides = [1, 1]} : vector<8x2xf32> to vector<1x2xf32>
    %c0_20 = arith.constant 0 : index
    %c0_21 = arith.constant 0 : index
    %26 = memref.load %arg9[%c0_20, %c0_21] : memref<1x1xf32, #tpu.memory_space<smem>>
    %27 = vector.broadcast %26 : f32 to vector<1x2xf32>
    %28 = arith.addf %25, %27 : vector<1x2xf32>
    %c0_22 = arith.constant 0 : index
    %c0_23 = arith.constant 0 : index
    %29 = vector.load %arg10[%c0_22, %c0_23] : memref<1x2xf32, #tpu.memory_space<vmem>>, vector<1x2xf32>
    tpu.vector_store %arg10[%c0_22, %c0_23], %28 {strides = array<i32>} : memref<1x2xf32, #tpu.memory_space<vmem>>, vector<1x2xf32>,
    return
  }
  func.func @transform_0(%arg0: i32) -> (i32, i32) {
    %c0_i32 = arith.constant 0 : i32
    %c0_i32_0 = arith.constant 0 : i32
    return %arg0, %c0_i32 : i32, i32
  }
  func.func @transform_1(%arg0: i32) -> (i32, i32) {
    %c0_i32 = arith.constant 0 : i32
    %c0_i32_0 = arith.constant 0 : i32
    return %arg0, %c0_i32 : i32, i32
  }
  func.func @transform_2(%arg0: i32) -> (i32, i32) {
    %c0_i32 = arith.constant 0 : i32
    %c0_i32_0 = arith.constant 0 : i32
    %c0_i32_1 = arith.constant 0 : i32
    return %c0_i32, %c0_i32_0 : i32, i32
  }
  func.func @transform_3(%arg0: i32) -> (i32, i32) {
    %c0_i32 = arith.constant 0 : i32
    %c0_i32_0 = arith.constant 0 : i32
    %c0_i32_1 = arith.constant 0 : i32
    return %c0_i32, %c0_i32_0 : i32, i32
  }
  func.func @transform_4(%arg0: i32) -> (i32, i32) {
    %c0_i32 = arith.constant 0 : i32
    %c0_i32_0 = arith.constant 0 : i32
    %c0_i32_1 = arith.constant 0 : i32
    return %c0_i32, %c0_i32_0 : i32, i32
  }
  func.func @transform_5(%arg0: i32) -> (i32, i32) {
    %c0_i32 = arith.constant 0 : i32
    %c0_i32_0 = arith.constant 0 : i32
    %c0_i32_1 = arith.constant 0 : i32
    return %c0_i32, %c0_i32_0 : i32, i32
  }
  func.func @transform_6(%arg0: i32) -> (i32, i32) {
    %c0_i32 = arith.constant 0 : i32
    %c0_i32_0 = arith.constant 0 : i32
    %c0_i32_1 = arith.constant 0 : i32
    return %c0_i32, %c0_i32_0 : i32, i32
  }
  func.func @transform_7(%arg0: i32) -> (i32, i32) {
    %c0_i32 = arith.constant 0 : i32
    %c0_i32_0 = arith.constant 0 : i32
    %c0_i32_1 = arith.constant 0 : i32
    return %c0_i32, %c0_i32_0 : i32, i32
  }
  func.func @transform_8(%arg0: i32) -> (i32, i32) {
    %c0_i32 = arith.constant 0 : i32
    %c0_i32_0 = arith.constant 0 : i32
    %c0_i32_1 = arith.constant 0 : i32
    return %c0_i32, %c0_i32_0 : i32, i32
  }
  func.func @transform_9(%arg0: i32) -> (i32, i32) {
    %c0_i32 = arith.constant 0 : i32
    %c0_i32_0 = arith.constant 0 : i32
    return %c0_i32, %arg0 : i32, i32
  }
}

</mosaic_0001>

<llo_original>
// kernel: network_forward.1
$region0: #{network_forward.1}
  #allocation0 [shape = 'u32[]', space=smem, size = 0x4, offset = 0x4, fixed_abs, tag = 'smem constant byte address 0x4 - core index']
  #allocation1 [shape = 'u32[144,128]{1,0:T(1,128)}', space=vmem, size = 0x12000, scoped, tag = 'internal scratch']
  #allocation2 [shape = 'f32[1,1]{1,0:T(1,128)S(6)}', space=smem, size = 0x200, scoped, tag = 'scoped memory for network_forward.1']
  %s0 = inlined_call_operand.hbm [shape: f32[2,16], index: 0, kind: input, shape index: {}]
  %s1 = inlined_call_operand.hbm [shape: f32[2,8], index: 1, kind: input, shape index: {}]
  %s2 = inlined_call_operand.vmem [shape: bf16[16,128], index: 2, kind: input, shape index: {}]
  %s3 = inlined_call_operand.vmem [shape: bf16[8,128], index: 3, kind: input, shape index: {}]
  %s4 = inlined_call_operand.hbm [shape: f32[1,128], index: 4, kind: input, shape index: {}]
  %s5 = inlined_call_operand.hbm [shape: bf16[128,128], index: 5, kind: input, shape index: {}]
  %s6 = inlined_call_operand.hbm [shape: f32[1,128], index: 6, kind: input, shape index: {}]
  %s7 = inlined_call_operand.hbm [shape: bf16[8,128], index: 7, kind: input, shape index: {}]
  %s8 = inlined_call_operand.<no memory space> [shape: f32[1,1], index: 8, kind: input, shape index: {}]
  %s9 = inlined_call_operand.hbm [shape: f32[1,2], index: 9, kind: output, shape index: {}]
  %s10 = sld [smem:[#allocation0]]
  $region70: #{network_forward.1} parent=0
    _
  %s12 = ssub.s32 1, %s10
  %s13 = scalar_select 0, %s12, %s10
  %14 = sst [smem:[#allocation2]] %s8
  $region1: #{network_forward.1} parent=0
    #allocation3 [shape = 'u8[1024]{0}', space=vmem, size = 0x400, scoped, tag = 'input window, operand 0, single buffered']
    #allocation4 [shape = 's32[1]{0}', space=sflag, size = 0x4, scoped, tag = 'scoped memory for network_forward.1']
    #allocation5 [shape = 's32[1]{0}', space=sflag, size = 0x4, scoped, tag = 'scoped memory for network_forward.1']
    #allocation6 [shape = 'u8[1024]{0}', space=vmem, size = 0x400, scoped, tag = 'input window, operand 1, single buffered']
    #allocation7 [shape = 's32[1]{0}', space=sflag, size = 0x4, scoped, tag = 'scoped memory for network_forward.1']
    #allocation8 [shape = 'u8[512]{0}', space=vmem, size = 0x400, scoped, tag = 'input window, operand 4, single buffered']
    #allocation9 [shape = 'u8[32768]{0}', space=vmem, size = 0x8000, scoped, tag = 'input window, operand 5, single buffered']
    #allocation10 [shape = 's32[1]{0}', space=sflag, size = 0x4, scoped, tag = 'scoped memory for network_forward.1']
    #allocation11 [shape = 'u8[512]{0}', space=vmem, size = 0x400, scoped, tag = 'input window, operand 6, single buffered']
    #allocation12 [shape = 'u8[2048]{0}', space=vmem, size = 0x800, scoped, tag = 'input window, operand 7, single buffered']
    #allocation13 [shape = 's32[1]{0}', space=sflag, size = 0x4, scoped, tag = 'scoped memory for network_forward.1']
    #allocation14 [shape = 'u8[512]{0}', space=vmem, size = 0x400, scoped, tag = 'output window, operand 0, single buffered']
    %15 = vsyncpa [#allocation4], 0
    %16 = vsyncpa [#allocation7], 0
    %17 = vsyncpa [#allocation10], 0
    %18 = vsyncpa [#allocation13], 0
    %19 = vsyncpa [#allocation5], 0
    // Predicated region
    $region2: #{network_forward.1} parent=1 // pred_check
      _
    $region3: #{network_forward.1} parent=1 // pred_check_branch
      %21 = sbr.rel (0) target = $region5
    $region4: #{network_forward.1} parent=1 // pred_region
      %s23 = ssub.s32 32, 32
      %24 = vsyncadd [#allocation4], %s23
      %s26 = sshll.u32 [#allocation3], 4
      %s27 = int_to_ptr.vmem [resolvable:$true] %s26
      %29 = dma.hbm_to_vmem [thread:$0]  %s0, 32, %s27, [#allocation4]
    $region5: #{network_forward.1} parent=1 // pred_fallthru
      _
    // Predicated region
    $region6: #{network_forward.1} parent=1 // pred_check
      _
    $region7: #{network_forward.1} parent=1 // pred_check_branch
      %31 = sbr.rel (0) target = $region9
    $region8: #{network_forward.1} parent=1 // pred_region
      %s33 = ssub.s32 32, 32
      %34 = vsyncadd [#allocation7], %s33
      %s36 = sshll.u32 [#allocation6], 4
      %s37 = int_to_ptr.vmem [resolvable:$true] %s36
      %39 = dma.hbm_to_vmem [thread:$0]  %s1, 32, %s37, [#allocation7]
    $region9: #{network_forward.1} parent=1 // pred_fallthru
      _
    // Predicated region
    $region10: #{network_forward.1} parent=1 // pred_check
      _
    $region11: #{network_forward.1} parent=1 // pred_check_branch
      %41 = sbr.rel (0) target = $region13
    $region12: #{network_forward.1} parent=1 // pred_region
      _
    $region13: #{network_forward.1} parent=1 // pred_fallthru
      _
    // Predicated region
    $region14: #{network_forward.1} parent=1 // pred_check
      _
    $region15: #{network_forward.1} parent=1 // pred_check_branch
      %43 = sbr.rel (0) target = $region17
    $region16: #{network_forward.1} parent=1 // pred_region
      _
    $region17: #{network_forward.1} parent=1 // pred_fallthru
      _
    // Predicated region
    $region18: #{network_forward.1} parent=1 // pred_check
      _
    $region19: #{network_forward.1} parent=1 // pred_check_branch
      %45 = sbr.rel (0) target = $region21
    $region20: #{network_forward.1} parent=1 // pred_region
      %s47 = ssub.s32 16, 16
      %48 = vsyncadd [#allocation7], %s47
      %s50 = sshll.u32 [#allocation8], 4
      %s51 = int_to_ptr.vmem [resolvable:$true] %s50
      %53 = dma.hbm_to_vmem [thread:$0]  %s4, 16, %s51, [#allocation7]
    $region21: #{network_forward.1} parent=1 // pred_fallthru
      _
    // Predicated region
    $region22: #{network_forward.1} parent=1 // pred_check
      _
    $region23: #{network_forward.1} parent=1 // pred_check_branch
      %55 = sbr.rel (0) target = $region25
    $region24: #{network_forward.1} parent=1 // pred_region
      %s57 = ssub.s32 1024, 1024
      %58 = vsyncadd [#allocation10], %s57
      %s59 = sshll.u32 [#allocation9], 4
      %s60 = int_to_ptr.vmem [resolvable:$true] %s59
      %65 = dma.hbm_to_vmem [thread:$0]  %s5, 1024, %s60, [#allocation10], 64, 64, 4
    $region25: #{network_forward.1} parent=1 // pred_fallthru
      _
    // Predicated region
    $region26: #{network_forward.1} parent=1 // pred_check
      _
    $region27: #{network_forward.1} parent=1 // pred_check_branch
      %67 = sbr.rel (0) target = $region29
    $region28: #{network_forward.1} parent=1 // pred_region
      %s69 = ssub.s32 16, 16
      %70 = vsyncadd [#allocation10], %s69
      %s72 = sshll.u32 [#allocation11], 4
      %s73 = int_to_ptr.vmem [resolvable:$true] %s72
      %75 = dma.hbm_to_vmem [thread:$0]  %s6, 16, %s73, [#allocation10]
    $region29: #{network_forward.1} parent=1 // pred_fallthru
      _
    // Predicated region
    $region30: #{network_forward.1} parent=1 // pred_check
      _
    $region31: #{network_forward.1} parent=1 // pred_check_branch
      %77 = sbr.rel (0) target = $region33
    $region32: #{network_forward.1} parent=1 // pred_region
      %s79 = ssub.s32 64, 64
      %80 = vsyncadd [#allocation13], %s79
      %s82 = sshll.u32 [#allocation12], 4
      %s83 = int_to_ptr.vmem [resolvable:$true] %s82
      %85 = dma.hbm_to_vmem [thread:$0]  %s7, 64, %s83, [#allocation13]
    $region33: #{network_forward.1} parent=1 // pred_fallthru
      _
    // Predicated region
    $region34: #{network_forward.1} parent=1 // pred_check
      _
    $region35: #{network_forward.1} parent=1 // pred_check_branch
      %87 = sbr.rel (0) target = $region37
    $region36: #{network_forward.1} parent=1 // pred_region
      _
    $region37: #{network_forward.1} parent=1 // pred_fallthru
      _
    // Predicated region
    $region38: #{network_forward.1} parent=1 // pred_check
      _
    $region39: #{network_forward.1} parent=1 // pred_check_branch
      %89 = sbr.rel (0) target = $region41
    $region40: #{network_forward.1} parent=1 // pred_region
      %90 = dma.done [#allocation4], 32
    $region41: #{network_forward.1} parent=1 // pred_fallthru
      _
    // Predicated region
    $region42: #{network_forward.1} parent=1 // pred_check
      _
    $region43: #{network_forward.1} parent=1 // pred_check_branch
      %92 = sbr.rel (0) target = $region45
    $region44: #{network_forward.1} parent=1 // pred_region
      %93 = dma.done [#allocation7], 32
    $region45: #{network_forward.1} parent=1 // pred_fallthru
      _
    // Predicated region
    $region46: #{network_forward.1} parent=1 // pred_check
      _
    $region47: #{network_forward.1} parent=1 // pred_check_branch
      %95 = sbr.rel (0) target = $region49
    $region48: #{network_forward.1} parent=1 // pred_region
      %96 = dma.done [#allocation7], 16
    $region49: #{network_forward.1} parent=1 // pred_fallthru
      _
    // Predicated region
    $region50: #{network_forward.1} parent=1 // pred_check
      _
    $region51: #{network_forward.1} parent=1 // pred_check_branch
      %98 = sbr.rel (0) target = $region53
    $region52: #{network_forward.1} parent=1 // pred_region
      %99 = dma.done [#allocation10], 1024
    $region53: #{network_forward.1} parent=1 // pred_fallthru
      _
    // Predicated region
    $region54: #{network_forward.1} parent=1 // pred_check
      _
    $region55: #{network_forward.1} parent=1 // pred_check_branch
      %101 = sbr.rel (0) target = $region57
    $region56: #{network_forward.1} parent=1 // pred_region
      %102 = dma.done [#allocation10], 16
    $region57: #{network_forward.1} parent=1 // pred_fallthru
      _
    // Predicated region
    $region58: #{network_forward.1} parent=1 // pred_check
      _
    $region59: #{network_forward.1} parent=1 // pred_check_branch
      %104 = sbr.rel (0) target = $region61
    $region60: #{network_forward.1} parent=1 // pred_region
      %105 = dma.done [#allocation13], 64
    $region61: #{network_forward.1} parent=1 // pred_fallthru
      _
    %v107 = vld [vmem:[#allocation3] sm:$0x3]
    %v108 = vpack.c.bf16 %v107, %v107
    %v109 = vld [vmem:[#allocation6] sm:$0x3]
    %v110 = vpack.c.bf16 %v109, %v109
    %v111 = vld [vmem:[%s2] sm:$0xf]
    %v112 = vld [vmem:[%s2 + $0x4] sm:$0xf]
    %v113 = vld [vmem:[%s3] sm:$0xf]
    %vm114 = vcmask 64512
    %v116 = vsel %vm114, %v110, 0
    %vm118 = vcmask 1043456
    %v120 = vsel %vm118, %v113, 0
    %122 = vmatprep.subr.bf16.mxu0 0
    %123 = vmatpush1.bf16.msra.mxu0 0
    %124 = vmatprep.subr.bf16.mxu0 0
    %125 = vmatpush1.bf16.msra.mxu0 0
    %126 = vmatprep.subr.bf16.mxu0 0
    %127 = vmatpush1.bf16.msra.mxu0 0
    %128 = vmatprep.subr.bf16.mxu0 0
    %129 = vmatpush1.bf16.msra.mxu0 0
    %130 = vmatprep.subr.bf16.mxu0 0
    %131 = vmatpush1.bf16.msra.mxu0 0
    %132 = vmatprep.subr.bf16.mxu0 0
    %133 = vmatpush1.bf16.msra.mxu0 0
    %134 = vmatprep.subr.bf16.mxu0 0
    %135 = vmatpush1.bf16.msra.mxu0 0
    %136 = vmatprep.subr.bf16.mxu0 0
    %137 = vmatpush1.bf16.msra.mxu0 %v120
    %138 = vmatprep.subr.bf16.mxu0 0
    %139 = vmatpush2.bf16.msra.mxu0 0
    %140 = vmatprep.subr.bf16.mxu0 0
    %141 = vmatpush2.bf16.msra.mxu0 0
    %142 = vmatprep.subr.bf16.mxu0 0
    %143 = vmatpush2.bf16.msra.mxu0 0
    %144 = vmatprep.subr.bf16.mxu0 0
    %145 = vmatpush2.bf16.msra.mxu0 0
    %146 = vmatprep.subr.bf16.mxu0 0
    %147 = vmatpush2.bf16.msra.mxu0 0
    %148 = vmatprep.subr.bf16.mxu0 0
    %149 = vmatpush2.bf16.msra.mxu0 0
    %150 = vmatprep.subr.bf16.mxu0 0
    %151 = vmatpush2.bf16.msra.mxu0 0
    %152 = vmatprep.subr.bf16.mxu0 0
    %153 = vmatpush2.bf16.msra.mxu0 0
    %154 = vmatprep.mubr.bf16.mxu0 0
    %155 = vmatmul.mubr.bf16.gmra.mxu0 %v116
    %v156 = vpop.f32.mrf.mxu0
    %v157 = vadd.f32 0.0, %v156
    %v158 = vpop.f32.mrf.mxu0
    %v159 = vpop.f32.mrf.mxu0
    %v160 = vpop.f32.mrf.mxu0
    %161 = vdwg.mxu0
    %v164 = vunpack.c.l.b16 %v111
    %v165 = vunpack.c.l.b16 %v112
    %v166 = vpack.c.b16 %v165, %v164
    %vm168 = vcmask 130048
    %v170 = vsel %vm168, %v108, 0
    %172 = vmatprep.subr.bf16.mxu0 0
    %173 = vmatpush1.bf16.msra.mxu0 0
    %174 = vmatprep.subr.bf16.mxu0 0
    %175 = vmatpush1.bf16.msra.mxu0 0
    %176 = vmatprep.subr.bf16.mxu0 0
    %177 = vmatpush1.bf16.msra.mxu0 0
    %178 = vmatprep.subr.bf16.mxu0 0
    %179 = vmatpush1.bf16.msra.mxu0 0
    %180 = vmatprep.subr.bf16.mxu0 0
    %181 = vmatpush1.bf16.msra.mxu0 0
    %182 = vmatprep.subr.bf16.mxu0 0
    %183 = vmatpush1.bf16.msra.mxu0 0
    %184 = vmatprep.subr.bf16.mxu0 0
    %185 = vmatpush1.bf16.msra.mxu0 0
    %186 = vmatprep.subr.bf16.mxu0 0
    %187 = vmatpush1.bf16.msra.mxu0 %v166
    %188 = vmatprep.subr.bf16.mxu0 0
    %189 = vmatpush2.bf16.msra.mxu0 0
    %190 = vmatprep.subr.bf16.mxu0 0
    %191 = vmatpush2.bf16.msra.mxu0 0
    %192 = vmatprep.subr.bf16.mxu0 0
    %193 = vmatpush2.bf16.msra.mxu0 0
    %194 = vmatprep.subr.bf16.mxu0 0
    %195 = vmatpush2.bf16.msra.mxu0 0
    %196 = vmatprep.subr.bf16.mxu0 0
    %197 = vmatpush2.bf16.msra.mxu0 0
    %198 = vmatprep.subr.bf16.mxu0 0
    %199 = vmatpush2.bf16.msra.mxu0 0
    %200 = vmatprep.subr.bf16.mxu0 0
    %201 = vmatpush2.bf16.msra.mxu0 0
    %202 = vmatprep.subr.bf16.mxu0 0
    %203 = vmatpush2.bf16.msra.mxu0 0
    %204 = vmatprep.mubr.bf16.mxu0 0
    %205 = vmatmul.mubr.bf16.gmra.mxu0 %v170
    %v206 = vpop.f32.mrf.mxu0
    %v207 = vadd.f32 %v157, %v206
    %v208 = vpop.f32.mrf.mxu0
    %v209 = vpop.f32.mrf.mxu0
    %v210 = vpop.f32.mrf.mxu0
    %211 = vdwg.mxu0
    %v212 = vld [vmem:[#allocation8] sm:$0x1]
    %v214 = vlaneseq
    %v215 = vshrl.u32 %v214, 7
    %v216 = vsub.s32 0, %v215
    %v217 = vrot.slane %v212, %v216
    %v219 = vadd.f32 %v207, %v217
    %v220 = vmax.f32 %v219, 0.0
    %v221 = vpack.c.bf16 %v220, %v220
    %v222 = vld [vmem:[#allocation9] sm:$0xf]
    %v223 = vld [vmem:[#allocation9 + $0x4] sm:$0xf]
    %v224 = vld [vmem:[#allocation9 + $0x8] sm:$0xf]
    %v225 = vld [vmem:[#allocation9 + $0xc] sm:$0xf]
    %v226 = vld [vmem:[#allocation9 + $0x10] sm:$0xf]
    %v227 = vld [vmem:[#allocation9 + $0x14] sm:$0xf]
    %v228 = vld [vmem:[#allocation9 + $0x18] sm:$0xf]
    %v229 = vld [vmem:[#allocation9 + $0x1c] sm:$0xf]
    %v230 = vld [vmem:[#allocation9 + $0x20] sm:$0xf]
    %v231 = vld [vmem:[#allocation9 + $0x24] sm:$0xf]
    %v232 = vld [vmem:[#allocation9 + $0x28] sm:$0xf]
    %v233 = vld [vmem:[#allocation9 + $0x2c] sm:$0xf]
    %v234 = vld [vmem:[#allocation9 + $0x30] sm:$0xf]
    %v235 = vld [vmem:[#allocation9 + $0x34] sm:$0xf]
    %v236 = vld [vmem:[#allocation9 + $0x38] sm:$0xf]
    %v237 = vld [vmem:[#allocation9 + $0x3c] sm:$0xf]
    %v238 = vld [vmem:[#allocation11] sm:$0x1]
    %v240 = vlaneseq
    %v241 = vshrl.u32 %v240, 7
    %v242 = vsub.s32 0, %v241
    %v243 = vrot.slane %v238, %v242
    %v261 = vunpack.c.l.b16 %v222
    %v262 = vunpack.c.l.b16 %v223
    %v263 = vunpack.c.l.b16 %v224
    %v264 = vunpack.c.l.b16 %v225
    %v265 = vunpack.c.l.b16 %v226
    %v266 = vunpack.c.l.b16 %v227
    %v267 = vunpack.c.l.b16 %v228
    %v268 = vunpack.c.l.b16 %v229
    %v269 = vunpack.c.l.b16 %v230
    %v270 = vunpack.c.l.b16 %v231
    %v271 = vunpack.c.l.b16 %v232
    %v272 = vunpack.c.l.b16 %v233
    %v273 = vunpack.c.l.b16 %v234
    %v274 = vunpack.c.l.b16 %v235
    %v275 = vunpack.c.l.b16 %v236
    %v276 = vunpack.c.l.b16 %v237
    %v277 = vpack.c.b16 %v262, %v261
    %v278 = vpack.c.b16 %v264, %v263
    %v279 = vpack.c.b16 %v266, %v265
    %v280 = vpack.c.b16 %v268, %v267
    %v281 = vpack.c.b16 %v270, %v269
    %v282 = vpack.c.b16 %v272, %v271
    %v283 = vpack.c.b16 %v274, %v273
    %v284 = vpack.c.b16 %v276, %v275
    %293 = vmatprep.subr.bf16.mxu0 0
    %294 = vmatpush1.bf16.msra.mxu0 %v284
    %295 = vmatprep.subr.bf16.mxu0 0
    %296 = vmatpush1.bf16.msra.mxu0 %v283
    %297 = vmatprep.subr.bf16.mxu0 0
    %298 = vmatpush1.bf16.msra.mxu0 %v282
    %299 = vmatprep.subr.bf16.mxu0 0
    %300 = vmatpush1.bf16.msra.mxu0 %v281
    %301 = vmatprep.subr.bf16.mxu0 0
    %302 = vmatpush1.bf16.msra.mxu0 %v280
    %303 = vmatprep.subr.bf16.mxu0 0
    %304 = vmatpush1.bf16.msra.mxu0 %v279
    %305 = vmatprep.subr.bf16.mxu0 0
    %306 = vmatpush1.bf16.msra.mxu0 %v278
    %307 = vmatprep.subr.bf16.mxu0 0
    %308 = vmatpush1.bf16.msra.mxu0 %v277
    %309 = vmatprep.subr.bf16.mxu0 0
    %310 = vmatpush2.bf16.msra.mxu0 0
    %311 = vmatprep.subr.bf16.mxu0 0
    %312 = vmatpush2.bf16.msra.mxu0 0
    %313 = vmatprep.subr.bf16.mxu0 0
    %314 = vmatpush2.bf16.msra.mxu0 0
    %315 = vmatprep.subr.bf16.mxu0 0
    %316 = vmatpush2.bf16.msra.mxu0 0
    %317 = vmatprep.subr.bf16.mxu0 0
    %318 = vmatpush2.bf16.msra.mxu0 0
    %319 = vmatprep.subr.bf16.mxu0 0
    %320 = vmatpush2.bf16.msra.mxu0 0
    %321 = vmatprep.subr.bf16.mxu0 0
    %322 = vmatpush2.bf16.msra.mxu0 0
    %323 = vmatprep.subr.bf16.mxu0 0
    %324 = vmatpush2.bf16.msra.mxu0 0
    %325 = vmatprep.mubr.bf16.mxu0 0
    %326 = vmatmul.mubr.bf16.gmra.mxu0 %v221
    %v327 = vpop.f32.mrf.mxu0
    %v328 = vadd.f32 %v243, %v327
    %v329 = vpop.f32.mrf.mxu0
    %v330 = vpop.f32.mrf.mxu0
    %v331 = vpop.f32.mrf.mxu0
    %332 = vdwg.mxu0
    %v333 = vmax.f32 %v328, 0.0
    %v334 = vpack.c.bf16 %v333, %v333
    %v335 = vld [vmem:[#allocation12] sm:$0xf]
    %336 = vmatprep.subr.bf16.mxu0 0
    %337 = vmatpush1.bf16.xpose.msra.mxu0 0
    %338 = vmatprep.subr.bf16.mxu0 0
    %339 = vmatpush1.bf16.xpose.msra.mxu0 0
    %340 = vmatprep.subr.bf16.mxu0 0
    %341 = vmatpush1.bf16.xpose.msra.mxu0 0
    %342 = vmatprep.subr.bf16.mxu0 0
    %343 = vmatpush1.bf16.xpose.msra.mxu0 0
    %344 = vmatprep.subr.bf16.mxu0 0
    %345 = vmatpush1.bf16.xpose.msra.mxu0 0
    %346 = vmatprep.subr.bf16.mxu0 0
    %347 = vmatpush1.bf16.xpose.msra.mxu0 0
    %348 = vmatprep.subr.bf16.mxu0 0
    %349 = vmatpush1.bf16.xpose.msra.mxu0 0
    %350 = vmatprep.subr.bf16.mxu0 0
    %351 = vmatpush1.bf16.xpose.msra.mxu0 %v334
    %352 = vmatprep.subr.bf16.mxu0 0
    %353 = vmatpush2.bf16.xpose.msra.mxu0 0
    %354 = vmatprep.subr.bf16.mxu0 0
    %355 = vmatpush2.bf16.xpose.msra.mxu0 0
    %356 = vmatprep.subr.bf16.mxu0 0
    %357 = vmatpush2.bf16.xpose.msra.mxu0 0
    %358 = vmatprep.subr.bf16.mxu0 0
    %359 = vmatpush2.bf16.xpose.msra.mxu0 0
    %360 = vmatprep.subr.bf16.mxu0 0
    %361 = vmatpush2.bf16.xpose.msra.mxu0 0
    %362 = vmatprep.subr.bf16.mxu0 0
    %363 = vmatpush2.bf16.xpose.msra.mxu0 0
    %364 = vmatprep.subr.bf16.mxu0 0
    %365 = vmatpush2.bf16.xpose.msra.mxu0 0
    %366 = vmatprep.subr.bf16.mxu0 0
    %367 = vmatpush2.bf16.xpose.msra.mxu0 0
    %368 = vmatprep.mubr.bf16.mxu0 0
    %369 = vmatmul.mubr.bf16.gmra.mxu0 %v335
    %v370 = vpop.f32.mrf.mxu0
    %v371 = vadd.f32 0.0, %v370
    %v372 = vpop.f32.mrf.mxu0
    %v373 = vpop.f32.mrf.mxu0
    %v374 = vpop.f32.mrf.mxu0
    %375 = vdwg.mxu0
    %s376 = sld [smem:[#allocation2]]
    %v377 = vstv %s376
    %v378 = vadd.f32 %v371, %v377
    %vm379 = vcmask 8192
    %380 = vst.msk [vmem:[#allocation14] sm:$0x1] %vm379, %v378
    // Predicated region
    $region62: #{network_forward.1} parent=1 // pred_check
      _
    $region63: #{network_forward.1} parent=1 // pred_check_branch
      %382 = sbr.rel (0) target = $region65
    $region64: #{network_forward.1} parent=1 // pred_region
      %s384 = ssub.s32 16, 16
      %385 = vsyncadd [#allocation5], %s384
      %s387 = sshll.u32 [#allocation14], 4
      %s388 = int_to_ptr.vmem [resolvable:$true] %s387
      %390 = dma.vmem_to_hbm [thread:$0]  %s388, 16, %s9, [#allocation5]
    $region65: #{network_forward.1} parent=1 // pred_fallthru
      _
    // Predicated region
    $region66: #{network_forward.1} parent=1 // pred_check
      _
    $region67: #{network_forward.1} parent=1 // pred_check_branch
      %392 = sbr.rel (0) target = $region69
    $region68: #{network_forward.1} parent=1 // pred_region
      %393 = dma.done [#allocation5], 16
    $region69: #{network_forward.1} parent=1 // pred_fallthru
      _
    %394 = vsyncpa [#allocation4], 1
    %395 = vsyncpa [#allocation7], 1
    %396 = vsyncpa [#allocation10], 1
    %397 = vsyncpa [#allocation13], 1
    %398 = vsyncpa [#allocation5], 1

</llo_original>
